<compile_context>
chip_gen: v7x
topology: tpu7x:2x2x1
jax: 0.10.0
libtpu: 0.0.40
codegen_flags: <defaults>
</compile_context>

<pallas_src>
import jax
import jax.numpy as jnp
from jax.experimental import pallas as pl
from jax.experimental.pallas import tpu as pltpu

_LANE = 128          # vreg lane width
_BF16_SUBLANE = 16   # rows per vreg for bf16-packed activations
_NEG_BIG = -1e30     # finite bias for padded logit columns -> exp underflows to exactly 0


def _round_up(n, m):
    return ((n + m - 1) // m) * m


def _cdiv(a, b):
    return (a + b - 1) // b


def _vmem_budget_bytes():
    """Generation-aware scoped-VMEM budget: ~48 MiB on v7x (64 MiB/TC), ~96 MiB on v5e/v6e."""
    cap = 64 * 1024 * 1024
    try:
        cap = int(pltpu.get_tpu_info().vmem_capacity_bytes)
    except Exception:
        pass
    return min((cap * 3) // 4, 96 * 1024 * 1024)


def _choose_batch_tile(B, In, h_pad, out_pad, vmem_budget):
    """Pick the batch tile so that
       * tm is a multiple of 128 for large B (full MXU M-tiles), else of 16 (bf16 sublanes),
       * the grid has >= 2 (up to 4) steps when B allows, keeping both v7x TensorCores busy,
       * streamed buffers + live f32 temps + resident weights fit inside the VMEM budget,
       * batch padding waste is bounded by a single tile."""
    align = _LANE if B >= 2 * _LANE else _BF16_SUBLANE

    # Per-batch-row VMEM bytes: x bf16 (x2 buffers) + y f32 (x2 buffers) + ~4 live f32 temps.
    per_row = In * 2 * 2 + out_pad * 4 * 2 + 4 * max(h_pad, out_pad) * 4
    resident = (In * h_pad + h_pad * out_pad) * 2 + (h_pad + out_pad) * 4
    tm_cap = max((vmem_budget - resident) // per_row, align)
    max_tile_rows = max((min(tm_cap, 1024) // align) * align, align)

    want_parallel = min(4, _cdiv(B, align))          # >=2 tiles for v7x when B is big enough
    n_tiles = max(_cdiv(B, max_tile_rows), want_parallel, 1)
    tm = min(_round_up(_cdiv(B, n_tiles), align), max_tile_rows)
    b_pad = _round_up(B, tm)
    return tm, b_pad


def _mlp_kernel(x_ref, w1_ref, b1_ref, w2_ref, b2_ref, y_ref):
    # Hidden layer: z = x @ W1 + b1 (bf16 MXU operands, f32 accumulate); sigmoid in f32 (EUP).
    z = jnp.dot(x_ref[...], w1_ref[...],
                preferred_element_type=jnp.float32) + b1_ref[...]
    h = jax.nn.sigmoid(z)

    # Output layer: s = h @ W2 + b2. Padded hidden units give h = 0.5 against zero W2 rows -> 0.
    s = jnp.dot(h.astype(jnp.bfloat16), w2_ref[...],
                preferred_element_type=jnp.float32) + b2_ref[...]

    # Numerically stable softmax over the (lane-padded) feature axis. Padded columns carry a
    # finite -1e30 bias, so exp(s - s_max) is exactly 0 there and they drop out of the sum.
    s_max = jnp.max(s, axis=1, keepdims=True)
    e = jnp.exp(s - s_max)
    denom = jnp.sum(e, axis=1, keepdims=True)
    y_ref[...] = (e * pl.reciprocal(denom, approx=True)).astype(y_ref.dtype)


def _build_call(tm, b_pad, In, h_pad, out_pad, vmem_budget, cost, single_buffer_weights):
    def resident_spec(shape):
        # Constant-index blocks only need one buffer; halving their footprint matters most
        # on v7x's 64 MiB VMEM.
        if single_buffer_weights:
            return pl.BlockSpec(shape, lambda i: (0, 0), pipeline_mode=pl.Buffered(1))
        return pl.BlockSpec(shape, lambda i: (0, 0))

    return pl.pallas_call(
        _mlp_kernel,
        out_shape=jax.ShapeDtypeStruct((b_pad, out_pad), jnp.float32),
        grid_spec=pl.GridSpec(
            grid=(b_pad // tm,),
            in_specs=[
                # x streams per batch tile (double-buffered by default).
                # TODO(synk): bump x to pipeline_mode=pl.Buffered(3) if a trace shows exposed
                # x DMA (large In with a short compute body).
                pl.BlockSpec((tm, In), lambda i: (i, 0)),
                resident_spec((In, h_pad)),      # W1: resident
                resident_spec((1, h_pad)),       # b1: resident
                resident_spec((h_pad, out_pad)),  # W2: resident
                resident_spec((1, out_pad)),     # b2: resident
            ],
            out_specs=pl.BlockSpec((tm, out_pad), lambda i: (i, 0)),
        ),
        compiler_params=pltpu.CompilerParams(
            dimension_semantics=("parallel",),
            vmem_limit_bytes=vmem_budget,
        ),
        cost_estimate=cost,
    )


def basic_neural_net(x, w1, b1, w2, b2):
    """x: (B, In); w1: (In, H); b1: (1, H); w2: (H, Out); b2: (1, Out) -> (B, Out) f32."""
    B, In = x.shape
    H = w1.shape[1]
    Out = w2.shape[1]

    # Lane-dense hidden and output widths.
    h_pad = _round_up(H, _LANE)
    out_pad = _round_up(Out, _LANE)
    # TODO(synk): if (In*h_pad + h_pad*out_pad)*2 bytes grows past ~16-24 MiB, add a hidden/
    # output tiling grid axis marked "arbitrary" with an accumulator scratch instead of
    # keeping both weights fully resident.

    vmem_budget = _vmem_budget_bytes()
    tm, b_pad = _choose_batch_tile(B, In, h_pad, out_pad, vmem_budget)

    # Pad / cast parameters once in the wrapper. Weights -> bf16 for the MXU; biases f32.
    #   * padded hidden cols: W1 = 0, b1 = 0  -> z = 0, sigmoid = 0.5, zeroed W2 rows kill it.
    #   * padded output cols: b2 = -1e30      -> softmax weight exactly 0.
    x_p = jnp.zeros((b_pad, In), jnp.bfloat16).at[:B].set(x.astype(jnp.bfloat16))
    w1_b = jnp.zeros((In, h_pad), jnp.bfloat16).at[:, :H].set(w1.astype(jnp.bfloat16))
    b1_f = jnp.zeros((1, h_pad), jnp.float32).at[:, :H].set(
        b1.reshape(1, H).astype(jnp.float32))
    w2_b = jnp.zeros((h_pad, out_pad), jnp.bfloat16).at[:H, :Out].set(w2.astype(jnp.bfloat16))
    b2_f = jnp.full((1, out_pad), _NEG_BIG, jnp.float32).at[:, :Out].set(
        b2.reshape(1, Out).astype(jnp.float32))

    cost = pl.CostEstimate(
        flops=2 * b_pad * (In * h_pad + h_pad * out_pad),
        transcendentals=b_pad * (h_pad + out_pad + 1),
        bytes_accessed=(x_p.size * 2 + w1_b.size * 2 + w2_b.size * 2
                        + b1_f.size * 4 + b2_f.size * 4 + b_pad * out_pad * 4),
    )

    args = (x_p, w1_b, b1_f, w2_b, b2_f)
    try:
        y_pad = _build_call(tm, b_pad, In, h_pad, out_pad, vmem_budget, cost,
                            single_buffer_weights=True)(*args)
    except Exception:
        # Fallback for stacks where pipeline_mode=pl.Buffered(1) is not supported by the
        # top-level pallas_call pipeliner; identical math, default double buffering.
        y_pad = _build_call(tm, b_pad, In, h_pad, out_pad, vmem_budget, cost,
                            single_buffer_weights=False)(*args)

    # Drop batch padding and the lane padding of the output features.
    return y_pad[:B, :Out]


if __name__ == "__main__":
    # Small shapes consistent with the module's forward: (batch, input_size).
    batch, input_size, hidden_size, output_size = 8, 32, 32, 16

    key = jax.random.PRNGKey(0)
    kx, kw1, kb1, kw2, kb2 = jax.random.split(key, 5)

    x = jax.random.normal(kx, (batch, input_size), dtype=jnp.float32)

    # Deterministic parameter init (PyTorch Linear-style uniform bounds), stored
    # pre-transposed as (in, out) for the x @ W convention used in the kernel.
    bound1 = 1.0 / jnp.sqrt(jnp.float32(input_size))
    w1 = jax.random.uniform(kw1, (input_size, hidden_size), jnp.float32, -bound1, bound1)
    b1 = jax.random.uniform(kb1, (1, hidden_size), jnp.float32, -bound1, bound1)

    bound2 = 1.0 / jnp.sqrt(jnp.float32(hidden_size))
    w2 = jax.random.uniform(kw2, (hidden_size, output_size), jnp.float32, -bound2, bound2)
    b2 = jax.random.uniform(kb2, (1, output_size), jnp.float32, -bound2, bound2)

    y = basic_neural_net(x, w1, b1, w2, b2)
    y = jax.block_until_ready(y)

    # Pure-JAX f32 reference of the same forward pass. Tolerances are relaxed vs. an
    # f32-only kernel because MXU operands are bf16 (f32 accumulation preserved).
    z_ref = x @ w1 + b1
    h_ref = jax.nn.sigmoid(z_ref)
    s_ref = h_ref @ w2 + b2
    y_ref = jax.nn.softmax(s_ref, axis=1)

    assert y.shape == (batch, output_size)
    assert jnp.allclose(y, y_ref, atol=2e-2, rtol=2e-2)
    assert jnp.allclose(jnp.sum(y, axis=1), 1.0, atol=5e-3)

    print("KERNEL_OK")
</pallas_src>

<mosaic_0001>
module attributes {stable_mosaic.version = 11 : i64} {
  func.func @_mlp_kernel(%arg0: i32, %arg1: memref<16x32xbf16, #tpu.memory_space<vmem>>, %arg2: memref<32x128xbf16, #tpu.memory_space<vmem>>, %arg3: memref<1x128xf32, #tpu.memory_space<vmem>>, %arg4: memref<128x128xbf16, #tpu.memory_space<vmem>>, %arg5: memref<1x128xf32, #tpu.memory_space<vmem>>, %arg6: memref<16x128xf32, #tpu.memory_space<vmem>>) attributes {dimension_semantics = [#tpu.dimension_semantics<parallel>], iteration_bounds = array<i64: 1>, scalar_prefetch = 0 : i64, scratch_operands = 0 : i64, tpu.core_type = #tpu.core_type<tc>, window_params = [{transform_indices = @transform_0, window_bounds = array<i64: 16, 32>}, {pipeline_mode = #tpu.pipeline_mode<synchronous>, transform_indices = @transform_1, window_bounds = array<i64: 32, 128>}, {pipeline_mode = #tpu.pipeline_mode<synchronous>, transform_indices = @transform_2, window_bounds = array<i64: 1, 128>}, {pipeline_mode = #tpu.pipeline_mode<synchronous>, transform_indices = @transform_3, window_bounds = array<i64: 128, 128>}, {pipeline_mode = #tpu.pipeline_mode<synchronous>, transform_indices = @transform_4, window_bounds = array<i64: 1, 128>}, {transform_indices = @transform_5, window_bounds = array<i64: 16, 128>}]} {
    %c0 = arith.constant 0 : index
    %c0_0 = arith.constant 0 : index
    %0 = vector.load %arg1[%c0, %c0_0] : memref<16x32xbf16, #tpu.memory_space<vmem>>, vector<16x32xbf16>
    %c0_1 = arith.constant 0 : index
    %c0_2 = arith.constant 0 : index
    %1 = vector.load %arg2[%c0_1, %c0_2] : memref<32x128xbf16, #tpu.memory_space<vmem>>, vector<32x128xbf16>
    %cst = arith.constant dense<0.000000e+00> : vector<16x128xf32>
    %2 = tpu.matmul %0, %1, %cst {dimension_numbers = #tpu.dot_dimension_numbers<[1], [0], [0], [1], [0, 0, 1, 1], [], []>} : vector<16x32xbf16>, vector<32x128xbf16>, vector<16x128xf32> -> vector<16x128xf32>
    %c0_3 = arith.constant 0 : index
    %c0_4 = arith.constant 0 : index
    %3 = vector.load %arg3[%c0_3, %c0_4] : memref<1x128xf32, #tpu.memory_space<vmem>>, vector<1x128xf32>
    %4 = vector.broadcast %3 : vector<1x128xf32> to vector<16x128xf32>
    %5 = arith.addf %2, %4 : vector<16x128xf32>
    %6 = arith.negf %5 : vector<16x128xf32>
    %7 = math.exp %6 : vector<16x128xf32>
    %cst_5 = arith.constant 1.000000e+00 : f32
    %8 = vector.broadcast %cst_5 : f32 to vector<16x128xf32>
    %9 = arith.addf %8, %7 : vector<16x128xf32>
    %10 = arith.divf %8, %9 : vector<16x128xf32>
    %11 = arith.truncf %10 : vector<16x128xf32> to vector<16x128xbf16>
    %c0_6 = arith.constant 0 : index
    %c0_7 = arith.constant 0 : index
    %12 = vector.load %arg4[%c0_6, %c0_7] : memref<128x128xbf16, #tpu.memory_space<vmem>>, vector<128x128xbf16>
    %cst_8 = arith.constant dense<0.000000e+00> : vector<16x128xf32>
    %13 = tpu.matmul %11, %12, %cst_8 {dimension_numbers = #tpu.dot_dimension_numbers<[1], [0], [0], [1], [0, 0, 1, 1], [], []>} : vector<16x128xbf16>, vector<128x128xbf16>, vector<16x128xf32> -> vector<16x128xf32>
    %c0_9 = arith.constant 0 : index
    %c0_10 = arith.constant 0 : index
    %14 = vector.load %arg5[%c0_9, %c0_10] : memref<1x128xf32, #tpu.memory_space<vmem>>, vector<1x128xf32>
    %15 = vector.broadcast %14 : vector<1x128xf32> to vector<16x128xf32>
    %16 = arith.addf %13, %15 : vector<16x128xf32>
    %cst_11 = arith.constant dense<0xFF800000> : vector<16xf32>
    %17 = vector.multi_reduction <maximumf>, %16, %cst_11 [1] : vector<16x128xf32> to vector<16xf32>
    %18 = vector.shape_cast %17 : vector<16xf32> to vector<16x1xf32>
    %19 = vector.broadcast %18 : vector<16x1xf32> to vector<16x128xf32>
    %20 = arith.subf %16, %19 : vector<16x128xf32>
    %21 = math.exp %20 : vector<16x128xf32>
    %cst_12 = arith.constant dense<0.000000e+00> : vector<16xf32>
    %22 = vector.multi_reduction <add>, %21, %cst_12 [1] : vector<16x128xf32> to vector<16xf32>
    %23 = vector.shape_cast %22 : vector<16xf32> to vector<16x1xf32>
    %24 = tpu.reciprocal %23 {approx = true} : vector<16x1xf32> -> vector<16x1xf32>
    %25 = vector.broadcast %24 : vector<16x1xf32> to vector<16x128xf32>
    %26 = arith.mulf %21, %25 : vector<16x128xf32>
    %c0_13 = arith.constant 0 : index
    %c0_14 = arith.constant 0 : index
    %27 = vector.load %arg6[%c0_13, %c0_14] : memref<16x128xf32, #tpu.memory_space<vmem>>, vector<16x128xf32>
    tpu.vector_store %arg6[%c0_13, %c0_14], %26 {strides = array<i32>} : memref<16x128xf32, #tpu.memory_space<vmem>>, vector<16x128xf32>,
    return
  }
  func.func @transform_0(%arg0: i32) -> (i32, i32) {
    %c0_i32 = arith.constant 0 : i32
    %c0_i32_0 = arith.constant 0 : i32
    return %arg0, %c0_i32 : i32, i32
  }
  func.func @transform_1(%arg0: i32) -> (i32, i32) {
    %c0_i32 = arith.constant 0 : i32
    %c0_i32_0 = arith.constant 0 : i32
    %c0_i32_1 = arith.constant 0 : i32
    return %c0_i32, %c0_i32_0 : i32, i32
  }
  func.func @transform_2(%arg0: i32) -> (i32, i32) {
    %c0_i32 = arith.constant 0 : i32
    %c0_i32_0 = arith.constant 0 : i32
    %c0_i32_1 = arith.constant 0 : i32
    return %c0_i32, %c0_i32_0 : i32, i32
  }
  func.func @transform_3(%arg0: i32) -> (i32, i32) {
    %c0_i32 = arith.constant 0 : i32
    %c0_i32_0 = arith.constant 0 : i32
    %c0_i32_1 = arith.constant 0 : i32
    return %c0_i32, %c0_i32_0 : i32, i32
  }
  func.func @transform_4(%arg0: i32) -> (i32, i32) {
    %c0_i32 = arith.constant 0 : i32
    %c0_i32_0 = arith.constant 0 : i32
    %c0_i32_1 = arith.constant 0 : i32
    return %c0_i32, %c0_i32_0 : i32, i32
  }
  func.func @transform_5(%arg0: i32) -> (i32, i32) {
    %c0_i32 = arith.constant 0 : i32
    %c0_i32_0 = arith.constant 0 : i32
    return %arg0, %c0_i32 : i32, i32
  }
}

module attributes {stable_mosaic.version = 11 : i64} {
  func.func @_mlp_kernel(%arg0: i32, %arg1: memref<16x32xbf16, #tpu.memory_space<vmem>>, %arg2: memref<32x128xbf16, #tpu.memory_space<vmem>>, %arg3: memref<1x128xf32, #tpu.memory_space<vmem>>, %arg4: memref<128x128xbf16, #tpu.memory_space<vmem>>, %arg5: memref<1x128xf32, #tpu.memory_space<vmem>>, %arg6: memref<16x128xf32, #tpu.memory_space<vmem>>) attributes {dimension_semantics = [#tpu.dimension_semantics<parallel>], iteration_bounds = array<i64: 1>, scalar_prefetch = 0 : i64, scratch_operands = 0 : i64, tpu.core_type = #tpu.core_type<tc>, window_params = [{transform_indices = @transform_0, window_bounds = array<i64: 16, 32>}, {pipeline_mode = #tpu.pipeline_mode<synchronous>, transform_indices = @transform_1, window_bounds = array<i64: 32, 128>}, {pipeline_mode = #tpu.pipeline_mode<synchronous>, transform_indices = @transform_2, window_bounds = array<i64: 1, 128>}, {pipeline_mode = #tpu.pipeline_mode<synchronous>, transform_indices = @transform_3, window_bounds = array<i64: 128, 128>}, {pipeline_mode = #tpu.pipeline_mode<synchronous>, transform_indices = @transform_4, window_bounds = array<i64: 1, 128>}, {transform_indices = @transform_5, window_bounds = array<i64: 16, 128>}]} {
    %c0 = arith.constant 0 : index
    %c0_0 = arith.constant 0 : index
    %0 = vector.load %arg1[%c0, %c0_0] : memref<16x32xbf16, #tpu.memory_space<vmem>>, vector<16x32xbf16>
    %c0_1 = arith.constant 0 : index
    %c0_2 = arith.constant 0 : index
    %1 = vector.load %arg2[%c0_1, %c0_2] : memref<32x128xbf16, #tpu.memory_space<vmem>>, vector<32x128xbf16>
    %cst = arith.constant dense<0.000000e+00> : vector<16x128xf32>
    %2 = tpu.matmul %0, %1, %cst {dimension_numbers = #tpu.dot_dimension_numbers<[1], [0], [0], [1], [0, 0, 1, 1], [], []>} : vector<16x32xbf16>, vector<32x128xbf16>, vector<16x128xf32> -> vector<16x128xf32>
    %c0_3 = arith.constant 0 : index
    %c0_4 = arith.constant 0 : index
    %3 = vector.load %arg3[%c0_3, %c0_4] : memref<1x128xf32, #tpu.memory_space<vmem>>, vector<1x128xf32>
    %4 = vector.broadcast %3 : vector<1x128xf32> to vector<16x128xf32>
    %5 = arith.addf %2, %4 : vector<16x128xf32>
    %6 = arith.negf %5 : vector<16x128xf32>
    %7 = math.exp %6 : vector<16x128xf32>
    %cst_5 = arith.constant 1.000000e+00 : f32
    %8 = vector.broadcast %cst_5 : f32 to vector<16x128xf32>
    %9 = arith.addf %8, %7 : vector<16x128xf32>
    %10 = arith.divf %8, %9 : vector<16x128xf32>
    %11 = arith.truncf %10 : vector<16x128xf32> to vector<16x128xbf16>
    %c0_6 = arith.constant 0 : index
    %c0_7 = arith.constant 0 : index
    %12 = vector.load %arg4[%c0_6, %c0_7] : memref<128x128xbf16, #tpu.memory_space<vmem>>, vector<128x128xbf16>
    %cst_8 = arith.constant dense<0.000000e+00> : vector<16x128xf32>
    %13 = tpu.matmul %11, %12, %cst_8 {dimension_numbers = #tpu.dot_dimension_numbers<[1], [0], [0], [1], [0, 0, 1, 1], [], []>} : vector<16x128xbf16>, vector<128x128xbf16>, vector<16x128xf32> -> vector<16x128xf32>
    %c0_9 = arith.constant 0 : index
    %c0_10 = arith.constant 0 : index
    %14 = vector.load %arg5[%c0_9, %c0_10] : memref<1x128xf32, #tpu.memory_space<vmem>>, vector<1x128xf32>
    %15 = vector.broadcast %14 : vector<1x128xf32> to vector<16x128xf32>
    %16 = arith.addf %13, %15 : vector<16x128xf32>
    %cst_11 = arith.constant dense<0xFF800000> : vector<16xf32>
    %17 = vector.multi_reduction <maximumf>, %16, %cst_11 [1] : vector<16x128xf32> to vector<16xf32>
    %18 = vector.shape_cast %17 : vector<16xf32> to vector<16x1xf32>
    %19 = vector.broadcast %18 : vector<16x1xf32> to vector<16x128xf32>
    %20 = arith.subf %16, %19 : vector<16x128xf32>
    %21 = math.exp %20 : vector<16x128xf32>
    %cst_12 = arith.constant dense<0.000000e+00> : vector<16xf32>
    %22 = vector.multi_reduction <add>, %21, %cst_12 [1] : vector<16x128xf32> to vector<16xf32>
    %23 = vector.shape_cast %22 : vector<16xf32> to vector<16x1xf32>
    %24 = tpu.reciprocal %23 {approx = true} : vector<16x1xf32> -> vector<16x1xf32>
    %25 = vector.broadcast %24 : vector<16x1xf32> to vector<16x128xf32>
    %26 = arith.mulf %21, %25 : vector<16x128xf32>
    %c0_13 = arith.constant 0 : index
    %c0_14 = arith.constant 0 : index
    %27 = vector.load %arg6[%c0_13, %c0_14] : memref<16x128xf32, #tpu.memory_space<vmem>>, vector<16x128xf32>
    tpu.vector_store %arg6[%c0_13, %c0_14], %26 {strides = array<i32>} : memref<16x128xf32, #tpu.memory_space<vmem>>, vector<16x128xf32>,
    return
  }
  func.func @transform_0(%arg0: i32) -> (i32, i32) {
    %c0_i32 = arith.constant 0 : i32
    %c0_i32_0 = arith.constant 0 : i32
    return %arg0, %c0_i32 : i32, i32
  }
  func.func @transform_1(%arg0: i32) -> (i32, i32) {
    %c0_i32 = arith.constant 0 : i32
    %c0_i32_0 = arith.constant 0 : i32
    %c0_i32_1 = arith.constant 0 : i32
    return %c0_i32, %c0_i32_0 : i32, i32
  }
  func.func @transform_2(%arg0: i32) -> (i32, i32) {
    %c0_i32 = arith.constant 0 : i32
    %c0_i32_0 = arith.constant 0 : i32
    %c0_i32_1 = arith.constant 0 : i32
    return %c0_i32, %c0_i32_0 : i32, i32
  }
  func.func @transform_3(%arg0: i32) -> (i32, i32) {
    %c0_i32 = arith.constant 0 : i32
    %c0_i32_0 = arith.constant 0 : i32
    %c0_i32_1 = arith.constant 0 : i32
    return %c0_i32, %c0_i32_0 : i32, i32
  }
  func.func @transform_4(%arg0: i32) -> (i32, i32) {
    %c0_i32 = arith.constant 0 : i32
    %c0_i32_0 = arith.constant 0 : i32
    %c0_i32_1 = arith.constant 0 : i32
    return %c0_i32, %c0_i32_0 : i32, i32
  }
  func.func @transform_5(%arg0: i32) -> (i32, i32) {
    %c0_i32 = arith.constant 0 : i32
    %c0_i32_0 = arith.constant 0 : i32
    return %arg0, %c0_i32 : i32, i32
  }
}

</mosaic_0001>

<llo_original>
// kernel: tpu_custom_call.1
$region0: #{tpu_custom_call.1}
  #allocation0 [shape = 'u32[]', space=smem, size = 0x4, offset = 0x4, fixed_abs, tag = 'smem constant byte address 0x4 - core index']
  #allocation1 [shape = 'u32[144,128]{1,0:T(1,128)}', space=vmem, size = 0x12000, scoped, tag = 'internal scratch']
  %s0 = inlined_call_operand.hbm [shape: bf16[16,32], index: 0, kind: input, shape index: {}]
  %s1 = inlined_call_operand.hbm [shape: bf16[32,128], index: 1, kind: input, shape index: {}]
  %s2 = inlined_call_operand.vmem [shape: f32[1,128], index: 2, kind: input, shape index: {}]
  %s3 = inlined_call_operand.hbm [shape: bf16[128,128], index: 3, kind: input, shape index: {}]
  %s4 = inlined_call_operand.vmem [shape: f32[1,128], index: 4, kind: input, shape index: {}]
  %s5 = inlined_call_operand.hbm [shape: f32[16,128], index: 5, kind: output, shape index: {}]
  %s6 = sld [smem:[#allocation0]]
  $region42: #{tpu_custom_call.1} parent=0
    _
  %s8 = ssub.s32 1, %s6
  %s9 = scalar_select 0, %s8, %s6
  $region1: #{tpu_custom_call.1} parent=0
    #allocation2 [shape = 'u8[4096]{0}', space=vmem, size = 0x1000, scoped, tag = 'input window, operand 0, single buffered']
    #allocation3 [shape = 's32[1]{0}', space=sflag, size = 0x4, scoped, tag = 'scoped memory for tpu_custom_call.1']
    #allocation4 [shape = 's32[1]{0}', space=sflag, size = 0x4, scoped, tag = 'scoped memory for tpu_custom_call.1']
    #allocation5 [shape = 'u8[8192]{0}', space=vmem, size = 0x2000, scoped, tag = 'input window, operand 1, single buffered']
    #allocation6 [shape = 's32[1]{0}', space=sflag, size = 0x4, scoped, tag = 'scoped memory for tpu_custom_call.1']
    #allocation7 [shape = 'u8[32768]{0}', space=vmem, size = 0x8000, scoped, tag = 'input window, operand 3, single buffered']
    #allocation8 [shape = 'u8[8192]{0}', space=vmem, size = 0x2000, scoped, tag = 'output window, operand 0, single buffered']
    %10 = vsyncpa [#allocation3], 0
    %11 = vsyncpa [#allocation6], 0
    %12 = vsyncpa [#allocation4], 0
    // Predicated region
    $region2: #{tpu_custom_call.1} parent=1 // pred_check
      _
    $region3: #{tpu_custom_call.1} parent=1 // pred_check_branch
      %14 = sbr.rel (0) target = $region5
    $region4: #{tpu_custom_call.1} parent=1 // pred_region
      %s16 = ssub.s32 128, 128
      %17 = vsyncadd [#allocation3], %s16
      %s18 = sshll.u32 [#allocation2], 4
      %s19 = int_to_ptr.vmem [resolvable:$true] %s18
      %24 = dma.hbm_to_vmem [thread:$0]  %s0, 128, %s19, [#allocation3], 64, 64, 4
    $region5: #{tpu_custom_call.1} parent=1 // pred_fallthru
      _
    // Predicated region
    $region6: #{tpu_custom_call.1} parent=1 // pred_check
      _
    $region7: #{tpu_custom_call.1} parent=1 // pred_check_branch
      %26 = sbr.rel (0) target = $region9
    $region8: #{tpu_custom_call.1} parent=1 // pred_region
      %s28 = ssub.s32 256, 256
      %29 = vsyncadd [#allocation6], %s28
      %s30 = sshll.u32 [#allocation5], 4
      %s31 = int_to_ptr.vmem [resolvable:$true] %s30
      %36 = dma.hbm_to_vmem [thread:$0]  %s1, 256, %s31, [#allocation6], 64, 64, 4
    $region9: #{tpu_custom_call.1} parent=1 // pred_fallthru
      _
    // Predicated region
    $region10: #{tpu_custom_call.1} parent=1 // pred_check
      _
    $region11: #{tpu_custom_call.1} parent=1 // pred_check_branch
      %38 = sbr.rel (0) target = $region13
    $region12: #{tpu_custom_call.1} parent=1 // pred_region
      _
    $region13: #{tpu_custom_call.1} parent=1 // pred_fallthru
      _
    // Predicated region
    $region14: #{tpu_custom_call.1} parent=1 // pred_check
      _
    $region15: #{tpu_custom_call.1} parent=1 // pred_check_branch
      %40 = sbr.rel (0) target = $region17
    $region16: #{tpu_custom_call.1} parent=1 // pred_region
      %s42 = ssub.s32 1024, 1024
      %43 = vsyncadd [#allocation6], %s42
      %s44 = sshll.u32 [#allocation7], 4
      %s45 = int_to_ptr.vmem [resolvable:$true] %s44
      %50 = dma.hbm_to_vmem [thread:$0]  %s3, 1024, %s45, [#allocation6], 64, 64, 4
    $region17: #{tpu_custom_call.1} parent=1 // pred_fallthru
      _
    // Predicated region
    $region18: #{tpu_custom_call.1} parent=1 // pred_check
      _
    $region19: #{tpu_custom_call.1} parent=1 // pred_check_branch
      %52 = sbr.rel (0) target = $region21
    $region20: #{tpu_custom_call.1} parent=1 // pred_region
      _
    $region21: #{tpu_custom_call.1} parent=1 // pred_fallthru
      _
    // Predicated region
    $region22: #{tpu_custom_call.1} parent=1 // pred_check
      _
    $region23: #{tpu_custom_call.1} parent=1 // pred_check_branch
      %54 = sbr.rel (0) target = $region25
    $region24: #{tpu_custom_call.1} parent=1 // pred_region
      %55 = dma.done [#allocation3], 128
    $region25: #{tpu_custom_call.1} parent=1 // pred_fallthru
      _
    // Predicated region
    $region26: #{tpu_custom_call.1} parent=1 // pred_check
      _
    $region27: #{tpu_custom_call.1} parent=1 // pred_check_branch
      %57 = sbr.rel (0) target = $region29
    $region28: #{tpu_custom_call.1} parent=1 // pred_region
      %58 = dma.done [#allocation6], 256
    $region29: #{tpu_custom_call.1} parent=1 // pred_fallthru
      _
    // Predicated region
    $region30: #{tpu_custom_call.1} parent=1 // pred_check
      _
    $region31: #{tpu_custom_call.1} parent=1 // pred_check_branch
      %60 = sbr.rel (0) target = $region33
    $region32: #{tpu_custom_call.1} parent=1 // pred_region
      %61 = dma.done [#allocation6], 1024
    $region33: #{tpu_custom_call.1} parent=1 // pred_fallthru
      _
    %v63 = vld [vmem:[#allocation2] sm:$0xf]
    %v64 = vld [vmem:[#allocation2 + $0x4] sm:$0xf]
    %v65 = vld [vmem:[#allocation5] sm:$0xf]
    %v66 = vld [vmem:[#allocation5 + $0x4] sm:$0xf]
    %v67 = vld [vmem:[#allocation5 + $0x8] sm:$0xf]
    %v68 = vld [vmem:[#allocation5 + $0xc] sm:$0xf]
    %v69 = vld [vmem:[%s2] sm:$0x1]
    %v71 = vlaneseq
    %v72 = vshrl.u32 %v71, 7
    %v73 = vsub.s32 0, %v72
    %v74 = vrot.slane %v69, %v73
    %v78 = vunpack.c.l.b16 %v63
    %v79 = vunpack.c.l.b16 %v64
    %v80 = vpack.c.b16 %v79, %v78
    %v85 = vunpack.c.l.b16 %v65
    %v86 = vunpack.c.l.b16 %v66
    %v87 = vunpack.c.l.b16 %v67
    %v88 = vunpack.c.l.b16 %v68
    %v89 = vpack.c.b16 %v86, %v85
    %v90 = vpack.c.b16 %v88, %v87
    %vm93 = vcmask 261120
    %v95 = vsel %vm93, %v80, 0
    %97 = vmatprep.subr.bf16.mxu0 0
    %98 = vmatpush1.bf16.msra.mxu0 %v89
    %99 = vmatprep.subr.bf16.mxu0 0
    %100 = vmatpush1.bf16.msra.mxu0 %v90
    %101 = vmatprep.subr.bf16.mxu0 0
    %102 = vmatpush1.bf16.msra.mxu0 0
    %103 = vmatprep.subr.bf16.mxu0 0
    %104 = vmatpush1.bf16.msra.mxu0 0
    %105 = vmatprep.subr.bf16.mxu0 0
    %106 = vmatpush1.bf16.msra.mxu0 0
    %107 = vmatprep.subr.bf16.mxu0 0
    %108 = vmatpush1.bf16.msra.mxu0 0
    %109 = vmatprep.subr.bf16.mxu0 0
    %110 = vmatpush1.bf16.msra.mxu0 0
    %111 = vmatprep.subr.bf16.mxu0 0
    %112 = vmatpush1.bf16.msra.mxu0 0
    %113 = vmatprep.subr.bf16.mxu0 0
    %114 = vmatpush1.bf16.msra.mxu0 0
    %115 = vmatprep.subr.bf16.mxu0 0
    %116 = vmatpush1.bf16.msra.mxu0 0
    %117 = vmatprep.subr.bf16.mxu0 0
    %118 = vmatpush1.bf16.msra.mxu0 0
    %119 = vmatprep.subr.bf16.mxu0 0
    %120 = vmatpush1.bf16.msra.mxu0 0
    %121 = vmatprep.subr.bf16.mxu0 0
    %122 = vmatpush1.bf16.msra.mxu0 0
    %123 = vmatprep.subr.bf16.mxu0 0
    %124 = vmatpush1.bf16.msra.mxu0 0
    %125 = vmatprep.subr.bf16.mxu0 0
    %126 = vmatpush1.bf16.msra.mxu0 0
    %127 = vmatprep.subr.bf16.mxu0 0
    %128 = vmatpush1.bf16.msra.mxu0 0
    %129 = vmatprep.mubr.bf16.mxu0 0
    %130 = vmatmul.mubr.bf16.gmra.mrb[0].mxu0 %v95
    %v131 = vpop.f32.mrb[0].mxu0
    %v132 = vadd.f32 %v74, %v131
    %v133 = vpop.f32.mrb[0].mxu0
    %v134 = vpop.f32.mrb[0].mxu0
    %v135 = vadd.f32 %v74, %v134
    %v136 = vpop.f32.mrb[0].mxu0
    %137 = vdwg.mxu0
    %v138 = vxor.u32 %v132, 2147483648
    %v139 = vxor.u32 %v135, 2147483648
    %v140 = vmul.f32 %v138, 1.442695
    %v141 = vpow.pop %v140
    %v142 = vmul.f32 %v139, 1.442695
    %v143 = vpow.pop %v142
    %v144 = vadd.f32 %v141, 1.0
    %v145 = vadd.f32 %v143, 1.0
    %v146 = vrcp.pop %v144
    %v147 = vmul.f32 1.0, %v146
    %v148 = vrcp.pop %v145
    %v149 = vmul.f32 1.0, %v148
    %v150 = vpack.c.bf16 %v149, %v147
    %v151 = vld [vmem:[#allocation7] sm:$0xf]
    %v152 = vld [vmem:[#allocation7 + $0x4] sm:$0xf]
    %v153 = vld [vmem:[#allocation7 + $0x8] sm:$0xf]
    %v154 = vld [vmem:[#allocation7 + $0xc] sm:$0xf]
    %v155 = vld [vmem:[#allocation7 + $0x10] sm:$0xf]
    %v156 = vld [vmem:[#allocation7 + $0x14] sm:$0xf]
    %v157 = vld [vmem:[#allocation7 + $0x18] sm:$0xf]
    %v158 = vld [vmem:[#allocation7 + $0x1c] sm:$0xf]
    %v159 = vld [vmem:[#allocation7 + $0x20] sm:$0xf]
    %v160 = vld [vmem:[#allocation7 + $0x24] sm:$0xf]
    %v161 = vld [vmem:[#allocation7 + $0x28] sm:$0xf]
    %v162 = vld [vmem:[#allocation7 + $0x2c] sm:$0xf]
    %v163 = vld [vmem:[#allocation7 + $0x30] sm:$0xf]
    %v164 = vld [vmem:[#allocation7 + $0x34] sm:$0xf]
    %v165 = vld [vmem:[#allocation7 + $0x38] sm:$0xf]
    %v166 = vld [vmem:[#allocation7 + $0x3c] sm:$0xf]
    %v167 = vld [vmem:[%s4] sm:$0x1]
    %v169 = vlaneseq
    %v170 = vshrl.u32 %v169, 7
    %v171 = vsub.s32 0, %v170
    %v172 = vrot.slane %v167, %v171
    %v190 = vunpack.c.l.b16 %v151
    %v191 = vunpack.c.l.b16 %v152
    %v192 = vunpack.c.l.b16 %v153
    %v193 = vunpack.c.l.b16 %v154
    %v194 = vunpack.c.l.b16 %v155
    %v195 = vunpack.c.l.b16 %v156
    %v196 = vunpack.c.l.b16 %v157
    %v197 = vunpack.c.l.b16 %v158
    %v198 = vunpack.c.l.b16 %v159
    %v199 = vunpack.c.l.b16 %v160
    %v200 = vunpack.c.l.b16 %v161
    %v201 = vunpack.c.l.b16 %v162
    %v202 = vunpack.c.l.b16 %v163
    %v203 = vunpack.c.l.b16 %v164
    %v204 = vunpack.c.l.b16 %v165
    %v205 = vunpack.c.l.b16 %v166
    %v206 = vpack.c.b16 %v191, %v190
    %v207 = vpack.c.b16 %v193, %v192
    %v208 = vpack.c.b16 %v195, %v194
    %v209 = vpack.c.b16 %v197, %v196
    %v210 = vpack.c.b16 %v199, %v198
    %v211 = vpack.c.b16 %v201, %v200
    %v212 = vpack.c.b16 %v203, %v202
    %v213 = vpack.c.b16 %v205, %v204
    %222 = vmatprep.subr.bf16.mxu0 0
    %223 = vmatpush1.bf16.msra.mxu0 %v206
    %224 = vmatprep.subr.bf16.mxu0 0
    %225 = vmatpush1.bf16.msra.mxu0 %v207
    %226 = vmatprep.subr.bf16.mxu0 0
    %227 = vmatpush1.bf16.msra.mxu0 %v208
    %228 = vmatprep.subr.bf16.mxu0 0
    %229 = vmatpush1.bf16.msra.mxu0 %v209
    %230 = vmatprep.subr.bf16.mxu0 0
    %231 = vmatpush1.bf16.msra.mxu0 %v210
    %232 = vmatprep.subr.bf16.mxu0 0
    %233 = vmatpush1.bf16.msra.mxu0 %v211
    %234 = vmatprep.subr.bf16.mxu0 0
    %235 = vmatpush1.bf16.msra.mxu0 %v212
    %236 = vmatprep.subr.bf16.mxu0 0
    %237 = vmatpush1.bf16.msra.mxu0 %v213
    %238 = vmatprep.subr.bf16.mxu0 0
    %239 = vmatpush1.bf16.msra.mxu0 0
    %240 = vmatprep.subr.bf16.mxu0 0
    %241 = vmatpush1.bf16.msra.mxu0 0
    %242 = vmatprep.subr.bf16.mxu0 0
    %243 = vmatpush1.bf16.msra.mxu0 0
    %244 = vmatprep.subr.bf16.mxu0 0
    %245 = vmatpush1.bf16.msra.mxu0 0
    %246 = vmatprep.subr.bf16.mxu0 0
    %247 = vmatpush1.bf16.msra.mxu0 0
    %248 = vmatprep.subr.bf16.mxu0 0
    %249 = vmatpush1.bf16.msra.mxu0 0
    %250 = vmatprep.subr.bf16.mxu0 0
    %251 = vmatpush1.bf16.msra.mxu0 0
    %252 = vmatprep.subr.bf16.mxu0 0
    %253 = vmatpush1.bf16.msra.mxu0 0
    %254 = vmatprep.mubr.bf16.mxu0 0
    %255 = vmatmul.mubr.bf16.gmra.mrb[0].mxu0 %v150
    %v256 = vpop.f32.mrb[0].mxu0
    %v257 = vadd.f32 %v172, %v256
    %v258 = vpop.f32.mrb[0].mxu0
    %v259 = vpop.f32.mrb[0].mxu0
    %v260 = vadd.f32 %v172, %v259
    %v261 = vpop.f32.mrb[0].mxu0
    %262 = vdwg.mxu0
    %263 = vmax.xlane.f32.xlu0 %v257
    %v264 = vpop.xlane.xlu0 %263
    %265 = vmax.xlane.f32.xlu0 %v260
    %v266 = vpop.xlane.xlu0 %265
    %v267 = vsub.f32 %v257, %v264
    %v268 = vsub.f32 %v260, %v266
    %v269 = vmul.f32 %v267, 1.442695
    %v270 = vpow.pop %v269
    %v271 = vmul.f32 %v268, 1.442695
    %v272 = vpow.pop %v271
    %273 = vadd.xlane.f32.xlu0 %v270
    %v274 = vpop.xlane.xlu0 %273
    %275 = vadd.xlane.f32.xlu0 %v272
    %v276 = vpop.xlane.xlu0 %275
    %v277 = vrcp.pop %v274
    %v278 = vrcp.pop %v276
    %v279 = vmul.f32 %v270, %v277
    %v280 = vmul.f32 %v272, %v278
    %281 = vst [vmem:[#allocation8] sm:$0xff] %v279
    %282 = vst [vmem:[#allocation8 + $0x8] sm:$0xff] %v280
    // Predicated region
    $region34: #{tpu_custom_call.1} parent=1 // pred_check
      _
    $region35: #{tpu_custom_call.1} parent=1 // pred_check_branch
      %284 = sbr.rel (0) target = $region37
    $region36: #{tpu_custom_call.1} parent=1 // pred_region
      %s286 = ssub.s32 256, 256
      %287 = vsyncadd [#allocation4], %s286
      %s288 = sshll.u32 [#allocation8], 4
      %s289 = int_to_ptr.vmem [resolvable:$true] %s288
      %294 = dma.vmem_to_hbm [thread:$0]  %s289, 256, %s5, [#allocation4], 128, 128, 8
    $region37: #{tpu_custom_call.1} parent=1 // pred_fallthru
      _
    // Predicated region
    $region38: #{tpu_custom_call.1} parent=1 // pred_check
      _
    $region39: #{tpu_custom_call.1} parent=1 // pred_check_branch
      %296 = sbr.rel (0) target = $region41
    $region40: #{tpu_custom_call.1} parent=1 // pred_region
      %297 = dma.done [#allocation4], 256
    $region41: #{tpu_custom_call.1} parent=1 // pred_fallthru
      _
    %298 = vsyncpa [#allocation3], 1
    %299 = vsyncpa [#allocation6], 1
    %300 = vsyncpa [#allocation4], 1

// kernel: tpu_custom_call.1
$region0: #{tpu_custom_call.1}
  #allocation0 [shape = 'u32[]', space=smem, size = 0x4, offset = 0x4, fixed_abs, tag = 'smem constant byte address 0x4 - core index']
  #allocation1 [shape = 'u32[144,128]{1,0:T(1,128)}', space=vmem, size = 0x12000, scoped, tag = 'internal scratch']
  %s0 = inlined_call_operand.hbm [shape: bf16[16,32], index: 0, kind: input, shape index: {}]
  %s1 = inlined_call_operand.hbm [shape: bf16[32,128], index: 1, kind: input, shape index: {}]
  %s2 = inlined_call_operand.vmem [shape: f32[1,128], index: 2, kind: input, shape index: {}]
  %s3 = inlined_call_operand.hbm [shape: bf16[128,128], index: 3, kind: input, shape index: {}]
  %s4 = inlined_call_operand.vmem [shape: f32[1,128], index: 4, kind: input, shape index: {}]
  %s5 = inlined_call_operand.hbm [shape: f32[16,128], index: 5, kind: output, shape index: {}]
  %s6 = sld [smem:[#allocation0]]
  $region42: #{tpu_custom_call.1} parent=0
    _
  %s8 = ssub.s32 1, %s6
  %s9 = scalar_select 0, %s8, %s6
  $region1: #{tpu_custom_call.1} parent=0
    #allocation2 [shape = 'u8[4096]{0}', space=vmem, size = 0x1000, scoped, tag = 'input window, operand 0, single buffered']
    #allocation3 [shape = 's32[1]{0}', space=sflag, size = 0x4, scoped, tag = 'scoped memory for tpu_custom_call.1']
    #allocation4 [shape = 's32[1]{0}', space=sflag, size = 0x4, scoped, tag = 'scoped memory for tpu_custom_call.1']
    #allocation5 [shape = 'u8[8192]{0}', space=vmem, size = 0x2000, scoped, tag = 'input window, operand 1, single buffered']
    #allocation6 [shape = 's32[1]{0}', space=sflag, size = 0x4, scoped, tag = 'scoped memory for tpu_custom_call.1']
    #allocation7 [shape = 'u8[32768]{0}', space=vmem, size = 0x8000, scoped, tag = 'input window, operand 3, single buffered']
    #allocation8 [shape = 'u8[8192]{0}', space=vmem, size = 0x2000, scoped, tag = 'output window, operand 0, single buffered']
    %10 = vsyncpa [#allocation3], 0
    %11 = vsyncpa [#allocation6], 0
    %12 = vsyncpa [#allocation4], 0
    // Predicated region
    $region2: #{tpu_custom_call.1} parent=1 // pred_check
      _
    $region3: #{tpu_custom_call.1} parent=1 // pred_check_branch
      %14 = sbr.rel (0) target = $region5
    $region4: #{tpu_custom_call.1} parent=1 // pred_region
      %s16 = ssub.s32 128, 128
      %17 = vsyncadd [#allocation3], %s16
      %s18 = sshll.u32 [#allocation2], 4
      %s19 = int_to_ptr.vmem [resolvable:$true] %s18
      %24 = dma.hbm_to_vmem [thread:$0]  %s0, 128, %s19, [#allocation3], 64, 64, 4
    $region5: #{tpu_custom_call.1} parent=1 // pred_fallthru
      _
    // Predicated region
    $region6: #{tpu_custom_call.1} parent=1 // pred_check
      _
    $region7: #{tpu_custom_call.1} parent=1 // pred_check_branch
      %26 = sbr.rel (0) target = $region9
    $region8: #{tpu_custom_call.1} parent=1 // pred_region
      %s28 = ssub.s32 256, 256
      %29 = vsyncadd [#allocation6], %s28
      %s30 = sshll.u32 [#allocation5], 4
      %s31 = int_to_ptr.vmem [resolvable:$true] %s30
      %36 = dma.hbm_to_vmem [thread:$0]  %s1, 256, %s31, [#allocation6], 64, 64, 4
    $region9: #{tpu_custom_call.1} parent=1 // pred_fallthru
      _
    // Predicated region
    $region10: #{tpu_custom_call.1} parent=1 // pred_check
      _
    $region11: #{tpu_custom_call.1} parent=1 // pred_check_branch
      %38 = sbr.rel (0) target = $region13
    $region12: #{tpu_custom_call.1} parent=1 // pred_region
      _
    $region13: #{tpu_custom_call.1} parent=1 // pred_fallthru
      _
    // Predicated region
    $region14: #{tpu_custom_call.1} parent=1 // pred_check
      _
    $region15: #{tpu_custom_call.1} parent=1 // pred_check_branch
      %40 = sbr.rel (0) target = $region17
    $region16: #{tpu_custom_call.1} parent=1 // pred_region
      %s42 = ssub.s32 1024, 1024
      %43 = vsyncadd [#allocation6], %s42
      %s44 = sshll.u32 [#allocation7], 4
      %s45 = int_to_ptr.vmem [resolvable:$true] %s44
      %50 = dma.hbm_to_vmem [thread:$0]  %s3, 1024, %s45, [#allocation6], 64, 64, 4
    $region17: #{tpu_custom_call.1} parent=1 // pred_fallthru
      _
    // Predicated region
    $region18: #{tpu_custom_call.1} parent=1 // pred_check
      _
    $region19: #{tpu_custom_call.1} parent=1 // pred_check_branch
      %52 = sbr.rel (0) target = $region21
    $region20: #{tpu_custom_call.1} parent=1 // pred_region
      _
    $region21: #{tpu_custom_call.1} parent=1 // pred_fallthru
      _
    // Predicated region
    $region22: #{tpu_custom_call.1} parent=1 // pred_check
      _
    $region23: #{tpu_custom_call.1} parent=1 // pred_check_branch
      %54 = sbr.rel (0) target = $region25
    $region24: #{tpu_custom_call.1} parent=1 // pred_region
      %55 = dma.done [#allocation3], 128
    $region25: #{tpu_custom_call.1} parent=1 // pred_fallthru
      _
    // Predicated region
    $region26: #{tpu_custom_call.1} parent=1 // pred_check
      _
    $region27: #{tpu_custom_call.1} parent=1 // pred_check_branch
      %57 = sbr.rel (0) target = $region29
    $region28: #{tpu_custom_call.1} parent=1 // pred_region
      %58 = dma.done [#allocation6], 256
    $region29: #{tpu_custom_call.1} parent=1 // pred_fallthru
      _
    // Predicated region
    $region30: #{tpu_custom_call.1} parent=1 // pred_check
      _
    $region31: #{tpu_custom_call.1} parent=1 // pred_check_branch
      %60 = sbr.rel (0) target = $region33
    $region32: #{tpu_custom_call.1} parent=1 // pred_region
      %61 = dma.done [#allocation6], 1024
    $region33: #{tpu_custom_call.1} parent=1 // pred_fallthru
      _
    %v63 = vld [vmem:[#allocation2] sm:$0xf]
    %v64 = vld [vmem:[#allocation2 + $0x4] sm:$0xf]
    %v65 = vld [vmem:[#allocation5] sm:$0xf]
    %v66 = vld [vmem:[#allocation5 + $0x4] sm:$0xf]
    %v67 = vld [vmem:[#allocation5 + $0x8] sm:$0xf]
    %v68 = vld [vmem:[#allocation5 + $0xc] sm:$0xf]
    %v69 = vld [vmem:[%s2] sm:$0x1]
    %v71 = vlaneseq
    %v72 = vshrl.u32 %v71, 7
    %v73 = vsub.s32 0, %v72
    %v74 = vrot.slane %v69, %v73
    %v78 = vunpack.c.l.b16 %v63
    %v79 = vunpack.c.l.b16 %v64
    %v80 = vpack.c.b16 %v79, %v78
    %v85 = vunpack.c.l.b16 %v65
    %v86 = vunpack.c.l.b16 %v66
    %v87 = vunpack.c.l.b16 %v67
    %v88 = vunpack.c.l.b16 %v68
    %v89 = vpack.c.b16 %v86, %v85
    %v90 = vpack.c.b16 %v88, %v87
    %vm93 = vcmask 261120
    %v95 = vsel %vm93, %v80, 0
    %97 = vmatprep.subr.bf16.mxu0 0
    %98 = vmatpush1.bf16.msra.mxu0 %v89
    %99 = vmatprep.subr.bf16.mxu0 0
    %100 = vmatpush1.bf16.msra.mxu0 %v90
    %101 = vmatprep.subr.bf16.mxu0 0
    %102 = vmatpush1.bf16.msra.mxu0 0
    %103 = vmatprep.subr.bf16.mxu0 0
    %104 = vmatpush1.bf16.msra.mxu0 0
    %105 = vmatprep.subr.bf16.mxu0 0
    %106 = vmatpush1.bf16.msra.mxu0 0
    %107 = vmatprep.subr.bf16.mxu0 0
    %108 = vmatpush1.bf16.msra.mxu0 0
    %109 = vmatprep.subr.bf16.mxu0 0
    %110 = vmatpush1.bf16.msra.mxu0 0
    %111 = vmatprep.subr.bf16.mxu0 0
    %112 = vmatpush1.bf16.msra.mxu0 0
    %113 = vmatprep.subr.bf16.mxu0 0
    %114 = vmatpush1.bf16.msra.mxu0 0
    %115 = vmatprep.subr.bf16.mxu0 0
    %116 = vmatpush1.bf16.msra.mxu0 0
    %117 = vmatprep.subr.bf16.mxu0 0
    %118 = vmatpush1.bf16.msra.mxu0 0
    %119 = vmatprep.subr.bf16.mxu0 0
    %120 = vmatpush1.bf16.msra.mxu0 0
    %121 = vmatprep.subr.bf16.mxu0 0
    %122 = vmatpush1.bf16.msra.mxu0 0
    %123 = vmatprep.subr.bf16.mxu0 0
    %124 = vmatpush1.bf16.msra.mxu0 0
    %125 = vmatprep.subr.bf16.mxu0 0
    %126 = vmatpush1.bf16.msra.mxu0 0
    %127 = vmatprep.subr.bf16.mxu0 0
    %128 = vmatpush1.bf16.msra.mxu0 0
    %129 = vmatprep.mubr.bf16.mxu0 0
    %130 = vmatmul.mubr.bf16.gmra.mrb[0].mxu0 %v95
    %v131 = vpop.f32.mrb[0].mxu0
    %v132 = vadd.f32 %v74, %v131
    %v133 = vpop.f32.mrb[0].mxu0
    %v134 = vpop.f32.mrb[0].mxu0
    %v135 = vadd.f32 %v74, %v134
    %v136 = vpop.f32.mrb[0].mxu0
    %137 = vdwg.mxu0
    %v138 = vxor.u32 %v132, 2147483648
    %v139 = vxor.u32 %v135, 2147483648
    %v140 = vmul.f32 %v138, 1.442695
    %v141 = vpow.pop %v140
    %v142 = vmul.f32 %v139, 1.442695
    %v143 = vpow.pop %v142
    %v144 = vadd.f32 %v141, 1.0
    %v145 = vadd.f32 %v143, 1.0
    %v146 = vrcp.pop %v144
    %v147 = vmul.f32 1.0, %v146
    %v148 = vrcp.pop %v145
    %v149 = vmul.f32 1.0, %v148
    %v150 = vpack.c.bf16 %v149, %v147
    %v151 = vld [vmem:[#allocation7] sm:$0xf]
    %v152 = vld [vmem:[#allocation7 + $0x4] sm:$0xf]
    %v153 = vld [vmem:[#allocation7 + $0x8] sm:$0xf]
    %v154 = vld [vmem:[#allocation7 + $0xc] sm:$0xf]
    %v155 = vld [vmem:[#allocation7 + $0x10] sm:$0xf]
    %v156 = vld [vmem:[#allocation7 + $0x14] sm:$0xf]
    %v157 = vld [vmem:[#allocation7 + $0x18] sm:$0xf]
    %v158 = vld [vmem:[#allocation7 + $0x1c] sm:$0xf]
    %v159 = vld [vmem:[#allocation7 + $0x20] sm:$0xf]
    %v160 = vld [vmem:[#allocation7 + $0x24] sm:$0xf]
    %v161 = vld [vmem:[#allocation7 + $0x28] sm:$0xf]
    %v162 = vld [vmem:[#allocation7 + $0x2c] sm:$0xf]
    %v163 = vld [vmem:[#allocation7 + $0x30] sm:$0xf]
    %v164 = vld [vmem:[#allocation7 + $0x34] sm:$0xf]
    %v165 = vld [vmem:[#allocation7 + $0x38] sm:$0xf]
    %v166 = vld [vmem:[#allocation7 + $0x3c] sm:$0xf]
    %v167 = vld [vmem:[%s4] sm:$0x1]
    %v169 = vlaneseq
    %v170 = vshrl.u32 %v169, 7
    %v171 = vsub.s32 0, %v170
    %v172 = vrot.slane %v167, %v171
    %v190 = vunpack.c.l.b16 %v151
    %v191 = vunpack.c.l.b16 %v152
    %v192 = vunpack.c.l.b16 %v153
    %v193 = vunpack.c.l.b16 %v154
    %v194 = vunpack.c.l.b16 %v155
    %v195 = vunpack.c.l.b16 %v156
    %v196 = vunpack.c.l.b16 %v157
    %v197 = vunpack.c.l.b16 %v158
    %v198 = vunpack.c.l.b16 %v159
    %v199 = vunpack.c.l.b16 %v160
    %v200 = vunpack.c.l.b16 %v161
    %v201 = vunpack.c.l.b16 %v162
    %v202 = vunpack.c.l.b16 %v163
    %v203 = vunpack.c.l.b16 %v164
    %v204 = vunpack.c.l.b16 %v165
    %v205 = vunpack.c.l.b16 %v166
    %v206 = vpack.c.b16 %v191, %v190
    %v207 = vpack.c.b16 %v193, %v192
    %v208 = vpack.c.b16 %v195, %v194
    %v209 = vpack.c.b16 %v197, %v196
    %v210 = vpack.c.b16 %v199, %v198
    %v211 = vpack.c.b16 %v201, %v200
    %v212 = vpack.c.b16 %v203, %v202
    %v213 = vpack.c.b16 %v205, %v204
    %222 = vmatprep.subr.bf16.mxu0 0
    %223 = vmatpush1.bf16.msra.mxu0 %v206
    %224 = vmatprep.subr.bf16.mxu0 0
    %225 = vmatpush1.bf16.msra.mxu0 %v207
    %226 = vmatprep.subr.bf16.mxu0 0
    %227 = vmatpush1.bf16.msra.mxu0 %v208
    %228 = vmatprep.subr.bf16.mxu0 0
    %229 = vmatpush1.bf16.msra.mxu0 %v209
    %230 = vmatprep.subr.bf16.mxu0 0
    %231 = vmatpush1.bf16.msra.mxu0 %v210
    %232 = vmatprep.subr.bf16.mxu0 0
    %233 = vmatpush1.bf16.msra.mxu0 %v211
    %234 = vmatprep.subr.bf16.mxu0 0
    %235 = vmatpush1.bf16.msra.mxu0 %v212
    %236 = vmatprep.subr.bf16.mxu0 0
    %237 = vmatpush1.bf16.msra.mxu0 %v213
    %238 = vmatprep.subr.bf16.mxu0 0
    %239 = vmatpush1.bf16.msra.mxu0 0
    %240 = vmatprep.subr.bf16.mxu0 0
    %241 = vmatpush1.bf16.msra.mxu0 0
    %242 = vmatprep.subr.bf16.mxu0 0
    %243 = vmatpush1.bf16.msra.mxu0 0
    %244 = vmatprep.subr.bf16.mxu0 0
    %245 = vmatpush1.bf16.msra.mxu0 0
    %246 = vmatprep.subr.bf16.mxu0 0
    %247 = vmatpush1.bf16.msra.mxu0 0
    %248 = vmatprep.subr.bf16.mxu0 0
    %249 = vmatpush1.bf16.msra.mxu0 0
    %250 = vmatprep.subr.bf16.mxu0 0
    %251 = vmatpush1.bf16.msra.mxu0 0
    %252 = vmatprep.subr.bf16.mxu0 0
    %253 = vmatpush1.bf16.msra.mxu0 0
    %254 = vmatprep.mubr.bf16.mxu0 0
    %255 = vmatmul.mubr.bf16.gmra.mrb[0].mxu0 %v150
    %v256 = vpop.f32.mrb[0].mxu0
    %v257 = vadd.f32 %v172, %v256
    %v258 = vpop.f32.mrb[0].mxu0
    %v259 = vpop.f32.mrb[0].mxu0
    %v260 = vadd.f32 %v172, %v259
    %v261 = vpop.f32.mrb[0].mxu0
    %262 = vdwg.mxu0
    %263 = vmax.xlane.f32.xlu0 %v257
    %v264 = vpop.xlane.xlu0 %263
    %265 = vmax.xlane.f32.xlu0 %v260
    %v266 = vpop.xlane.xlu0 %265
    %v267 = vsub.f32 %v257, %v264
    %v268 = vsub.f32 %v260, %v266
    %v269 = vmul.f32 %v267, 1.442695
    %v270 = vpow.pop %v269
    %v271 = vmul.f32 %v268, 1.442695
    %v272 = vpow.pop %v271
    %273 = vadd.xlane.f32.xlu0 %v270
    %v274 = vpop.xlane.xlu0 %273
    %275 = vadd.xlane.f32.xlu0 %v272
    %v276 = vpop.xlane.xlu0 %275
    %v277 = vrcp.pop %v274
    %v278 = vrcp.pop %v276
    %v279 = vmul.f32 %v270, %v277
    %v280 = vmul.f32 %v272, %v278
    %281 = vst [vmem:[#allocation8] sm:$0xff] %v279
    %282 = vst [vmem:[#allocation8 + $0x8] sm:$0xff] %v280
    // Predicated region
    $region34: #{tpu_custom_call.1} parent=1 // pred_check
      _
    $region35: #{tpu_custom_call.1} parent=1 // pred_check_branch
      %284 = sbr.rel (0) target = $region37
    $region36: #{tpu_custom_call.1} parent=1 // pred_region
      %s286 = ssub.s32 256, 256
      %287 = vsyncadd [#allocation4], %s286
      %s288 = sshll.u32 [#allocation8], 4
      %s289 = int_to_ptr.vmem [resolvable:$true] %s288
      %294 = dma.vmem_to_hbm [thread:$0]  %s289, 256, %s5, [#allocation4], 128, 128, 8
    $region37: #{tpu_custom_call.1} parent=1 // pred_fallthru
      _
    // Predicated region
    $region38: #{tpu_custom_call.1} parent=1 // pred_check
      _
    $region39: #{tpu_custom_call.1} parent=1 // pred_check_branch
      %296 = sbr.rel (0) target = $region41
    $region40: #{tpu_custom_call.1} parent=1 // pred_region
      %297 = dma.done [#allocation4], 256
    $region41: #{tpu_custom_call.1} parent=1 // pred_fallthru
      _
    %298 = vsyncpa [#allocation3], 1
    %299 = vsyncpa [#allocation6], 1
    %300 = vsyncpa [#allocation4], 1

</llo_original>
